<compile_context>
chip_gen: v7x
topology: tpu7x:2x2x1
jax: 0.10.0
libtpu: 0.0.40
codegen_flags: <defaults>
</compile_context>

<pallas_src>
import jax
import jax.numpy as jnp
from jax.experimental import pallas as pl
from jax.experimental.pallas import tpu as pltpu


def _round_up(n, m):
    return ((n + m - 1) // m) * m


def _vmem_capacity_bytes():
    try:
        return int(pltpu.get_tpu_info().vmem_capacity_bytes)
    except Exception:
        return 64 * 1024 * 1024  # conservative: assume v7x-sized VMEM


def _est_vmem_bytes(tb, dp, x_itemsize, out_itemsize, w_itemsize):
    return (2 * tb * dp * x_itemsize        # x tile, double-buffered
            + 2 * tb * dp * out_itemsize    # out tile, double-buffered
            + dp * 2 * dp * w_itemsize      # fused weight, single-buffered
            + 2 * dp * 4                    # fused bias (f32)
            + 6 * tb * dp * 4               # f32 pre/h/t/xf/combine temporaries
            + (2 << 20))                    # headroom


def _choose_batch_tiling(b, tb_max):
    """Balanced, 8-aligned batch tiles; >=2 grid steps when the batch allows."""
    bp8 = _round_up(b, 8)
    n = pl.cdiv(bp8, tb_max)
    if bp8 > 8:
        n = max(n, 2)                        # keep both v7x TensorCores busy
    tb = _round_up(pl.cdiv(bp8, n), 8)       # padding waste < 8 rows per tile
    n = pl.cdiv(bp8, tb)
    return n * tb, tb


def highway_kernel(x_ref, w_ref, b_ref, o_ref):
    d = o_ref.shape[-1]                      # padded feature dim (multiple of 128)
    x = x_ref[...]                           # [TB, Dp], native dtype (kept for combine)

    # Single fused MXU pass: [TB, Dp] @ [Dp, 2*Dp] -> plain | gate pre-activations.
    pre = jnp.dot(x.astype(w_ref.dtype), w_ref[...],
                  preferred_element_type=jnp.float32) + b_ref[...]

    h = jax.nn.sigmoid(pre[:, :d])           # plain branch (f32, EUP)
    t = jax.nn.sigmoid(pre[:, d:])           # gate branch  (f32, EUP)

    xf = x.astype(jnp.float32)
    # h*t + (1-t)*x  ==  x + t*(h - x)
    o_ref[...] = (xf + t * (h - xf)).astype(o_ref.dtype)


def pack_highway_params(w_plain, b_plain, w_gate, b_gate, *, matmul_dtype=None):
    """Pack PyTorch-style Linear params once (hoist out of the per-call path).

    w_*: [D, D] (nn.Linear weight layout), b_*: [D].
    Returns (w_cat [Dp, 2*Dp], b_cat [1, 2*Dp] f32), Dp = round_up(D, 128).
    """
    D = w_plain.shape[0]
    Dp = _round_up(D, 128)
    if matmul_dtype is None:
        # f32 has no native MXU path (v5e: bf16/int only; v6e/v7x: bf16 is the
        # full-rate path) -> default to bf16 operands, f32 accumulation.
        matmul_dtype = jnp.bfloat16 if w_plain.dtype == jnp.float32 else w_plain.dtype
    pad = Dp - D
    wp_t = jnp.pad(w_plain.T, ((0, pad), (0, pad)))
    wg_t = jnp.pad(w_gate.T, ((0, pad), (0, pad)))
    w_cat = jnp.concatenate([wp_t, wg_t], axis=1).astype(matmul_dtype)   # [Dp, 2*Dp]
    b_cat = jnp.concatenate(
        [jnp.pad(b_plain, (0, pad)), jnp.pad(b_gate, (0, pad))]
    ).reshape(1, 2 * Dp).astype(jnp.float32)                             # [1, 2*Dp]
    return w_cat, b_cat


def _call_pallas(xp, w_cat, b_cat, *, tb, bp, dp, out_dtype, vmem_limit,
                 single_buffer_weights):
    if single_buffer_weights:
        # Constant index_map -> single VMEM copy (no useless second buffer).
        w_spec = pl.BlockSpec((dp, 2 * dp), lambda i: (0, 0),
                              pipeline_mode=pl.Buffered(1))
        b_spec = pl.BlockSpec((1, 2 * dp), lambda i: (0, 0),
                              pipeline_mode=pl.Buffered(1))
    else:
        w_spec = pl.BlockSpec((dp, 2 * dp), lambda i: (0, 0))
        b_spec = pl.BlockSpec((1, 2 * dp), lambda i: (0, 0))

    return pl.pallas_call(
        highway_kernel,
        out_shape=jax.ShapeDtypeStruct((bp, dp), out_dtype),
        grid=(bp // tb,),
        in_specs=[
            pl.BlockSpec((tb, dp), lambda i: (i, 0)),   # x tile (pipelined)
            w_spec,                                     # fused weight (resident)
            b_spec,                                     # fused bias (resident)
        ],
        out_specs=pl.BlockSpec((tb, dp), lambda i: (i, 0)),
        compiler_params=pltpu.CompilerParams(
            dimension_semantics=("parallel",),
            vmem_limit_bytes=vmem_limit,
        ),
    )(xp, w_cat, b_cat)


def highway_forward(x, w_cat, b_cat, *, tb_max=1024):
    """x: [B, D]; (w_cat, b_cat) come from pack_highway_params (cached)."""
    B, D = x.shape
    dt = x.dtype
    Dp = w_cat.shape[0]
    assert Dp == _round_up(D, 128) and w_cat.shape[1] == 2 * Dp

    x_sz = jnp.dtype(dt).itemsize
    w_sz = jnp.dtype(w_cat.dtype).itemsize

    # Per-generation VMEM budget (v7x: 64 MiB physical, v5e/v6e: 128 MiB).
    capacity = _vmem_capacity_bytes()
    budget = (capacity * 3) // 4

    # Largest batch tile whose double-buffered x/out tiles + resident weight +
    # f32 intermediates fit the budget.
    tb_fit = tb_max
    while tb_fit > 8 and _est_vmem_bytes(tb_fit, Dp, x_sz, x_sz, w_sz) > budget:
        tb_fit //= 2
    tb_fit = max(tb_fit, 8)
    # TODO(synk): if even TB=8 exceeds the budget (very large D on v7x), stream
    # weight K-blocks over a second 'arbitrary' grid axis with an f32
    # accumulator instead of keeping the full [Dp, 2*Dp] weight VMEM-resident.

    Bp, TB = _choose_batch_tiling(B, tb_fit)

    est = _est_vmem_bytes(TB, Dp, x_sz, x_sz, w_sz)
    # Leave room for the double-buffered-weight fallback path as well.
    vmem_limit = int(min(capacity, est + Dp * 2 * Dp * w_sz + (8 << 20)))
    vmem_limit = max(vmem_limit, 16 * 1024 * 1024)

    # Zero padding is inert for the real output columns (padded x cols are 0,
    # padded weight rows are 0); padded rows/cols are sliced away below.
    xp = jnp.pad(x, ((0, Bp - B), (0, Dp - D)))

    try:
        out = _call_pallas(xp, w_cat, b_cat, tb=TB, bp=Bp, dp=Dp, out_dtype=dt,
                           vmem_limit=vmem_limit, single_buffer_weights=True)
    except Exception:
        # Fallback for jax versions without BlockSpec pipeline_mode/Buffered.
        out = _call_pallas(xp, w_cat, b_cat, tb=TB, bp=Bp, dp=Dp, out_dtype=dt,
                           vmem_limit=vmem_limit, single_buffer_weights=False)

    return out[:B, :D]


def highway_layer(x, w_plain, b_plain, w_gate, b_gate, *, matmul_dtype=None,
                  tb_max=1024):
    """Convenience wrapper (packing should be cached by callers that reuse
    the layer; see pack_highway_params + highway_forward)."""
    w_cat, b_cat = pack_highway_params(w_plain, b_plain, w_gate, b_gate,
                                       matmul_dtype=matmul_dtype)
    return highway_forward(x, w_cat, b_cat, tb_max=tb_max)


def highway_ref(x, w_plain, b_plain, w_gate, b_gate):
    h = jax.nn.sigmoid(x @ w_plain.T + b_plain)
    t = jax.nn.sigmoid(x @ w_gate.T + b_gate)
    return h * t + (1.0 - t) * x


if __name__ == "__main__":
    B, D = 8, 32  # batch, feature dim (D_in)

    key = jax.random.PRNGKey(0)
    kx, kwp, kbp, kwg, kbg = jax.random.split(key, 5)

    # Deterministic parameter init (shapes match nn.Linear(D_in, D_in)).
    bound = 1.0 / (D ** 0.5)
    x = jax.random.normal(kx, (B, D), dtype=jnp.float32)
    w_plain = jax.random.uniform(kwp, (D, D), jnp.float32, -bound, bound)
    b_plain = jax.random.uniform(kbp, (D,), jnp.float32, -bound, bound)
    w_gate = jax.random.uniform(kwg, (D, D), jnp.float32, -bound, bound)
    b_gate = jax.random.uniform(kbg, (D,), jnp.float32, -bound, bound)

    ref = highway_ref(x, w_plain, b_plain, w_gate, b_gate)

    # 1) Exact-dtype path (f32 MXU operands): tight tolerance vs reference.
    w_cat_f32, b_cat_f32 = pack_highway_params(
        w_plain, b_plain, w_gate, b_gate, matmul_dtype=jnp.float32)
    out_f32 = jax.block_until_ready(highway_forward(x, w_cat_f32, b_cat_f32))
    assert out_f32.shape == (B, D) and out_f32.dtype == x.dtype
    assert jnp.allclose(out_f32, ref, atol=1e-5, rtol=1e-5)

    # 2) Default fast path (bf16 MXU operands, f32 accumulation + epilogue).
    w_cat, b_cat = pack_highway_params(w_plain, b_plain, w_gate, b_gate)
    out = jax.block_until_ready(highway_forward(x, w_cat, b_cat))
    assert out.shape == (B, D) and out.dtype == x.dtype
    assert jnp.allclose(out, ref, atol=5e-2, rtol=5e-2)

    print("KERNEL_OK")
</pallas_src>

<mosaic_0001>
module attributes {stable_mosaic.version = 11 : i64} {
  func.func @highway_kernel(%arg0: i32, %arg1: memref<8x128xf32, #tpu.memory_space<vmem>>, %arg2: memref<128x256xf32, #tpu.memory_space<vmem>>, %arg3: memref<1x256xf32, #tpu.memory_space<vmem>>, %arg4: memref<8x128xf32, #tpu.memory_space<vmem>>) attributes {dimension_semantics = [#tpu.dimension_semantics<parallel>], iteration_bounds = array<i64: 1>, scalar_prefetch = 0 : i64, scratch_operands = 0 : i64, tpu.core_type = #tpu.core_type<tc>, window_params = [{transform_indices = @transform_0, window_bounds = array<i64: 8, 128>}, {pipeline_mode = #tpu.pipeline_mode<synchronous>, transform_indices = @transform_1, window_bounds = array<i64: 128, 256>}, {pipeline_mode = #tpu.pipeline_mode<synchronous>, transform_indices = @transform_2, window_bounds = array<i64: 1, 256>}, {transform_indices = @transform_3, window_bounds = array<i64: 8, 128>}]} {
    %c0 = arith.constant 0 : index
    %c0_0 = arith.constant 0 : index
    %0 = vector.load %arg1[%c0, %c0_0] : memref<8x128xf32, #tpu.memory_space<vmem>>, vector<8x128xf32>
    %c0_1 = arith.constant 0 : index
    %c0_2 = arith.constant 0 : index
    %1 = vector.load %arg2[%c0_1, %c0_2] : memref<128x256xf32, #tpu.memory_space<vmem>>, vector<128x256xf32>
    %cst = arith.constant dense<0.000000e+00> : vector<8x256xf32>
    %2 = tpu.matmul %0, %1, %cst {dimension_numbers = #tpu.dot_dimension_numbers<[1], [0], [0], [1], [0, 0, 1, 1], [], []>} : vector<8x128xf32>, vector<128x256xf32>, vector<8x256xf32> -> vector<8x256xf32>
    %c0_3 = arith.constant 0 : index
    %c0_4 = arith.constant 0 : index
    %3 = vector.load %arg3[%c0_3, %c0_4] : memref<1x256xf32, #tpu.memory_space<vmem>>, vector<1x256xf32>
    %4 = vector.broadcast %3 : vector<1x256xf32> to vector<8x256xf32>
    %5 = arith.addf %2, %4 : vector<8x256xf32>
    %6 = vector.extract_strided_slice %5 {offsets = [0, 0], sizes = [8, 128], strides = [1, 1]} : vector<8x256xf32> to vector<8x128xf32>
    %7 = arith.negf %6 : vector<8x128xf32>
    %8 = math.exp %7 : vector<8x128xf32>
    %cst_5 = arith.constant 1.000000e+00 : f32
    %9 = vector.broadcast %cst_5 : f32 to vector<8x128xf32>
    %10 = arith.addf %9, %8 : vector<8x128xf32>
    %11 = arith.divf %9, %10 : vector<8x128xf32>
    %12 = vector.extract_strided_slice %5 {offsets = [0, 128], sizes = [8, 128], strides = [1, 1]} : vector<8x256xf32> to vector<8x128xf32>
    %13 = arith.negf %12 : vector<8x128xf32>
    %14 = math.exp %13 : vector<8x128xf32>
    %cst_6 = arith.constant 1.000000e+00 : f32
    %15 = vector.broadcast %cst_6 : f32 to vector<8x128xf32>
    %16 = arith.addf %15, %14 : vector<8x128xf32>
    %17 = arith.divf %15, %16 : vector<8x128xf32>
    %18 = arith.subf %11, %0 : vector<8x128xf32>
    %19 = arith.mulf %17, %18 : vector<8x128xf32>
    %20 = arith.addf %0, %19 : vector<8x128xf32>
    %c0_7 = arith.constant 0 : index
    %c0_8 = arith.constant 0 : index
    %21 = vector.load %arg4[%c0_7, %c0_8] : memref<8x128xf32, #tpu.memory_space<vmem>>, vector<8x128xf32>
    tpu.vector_store %arg4[%c0_7, %c0_8], %20 {strides = array<i32>} : memref<8x128xf32, #tpu.memory_space<vmem>>, vector<8x128xf32>,
    return
  }
  func.func @transform_0(%arg0: i32) -> (i32, i32) {
    %c0_i32 = arith.constant 0 : i32
    %c0_i32_0 = arith.constant 0 : i32
    return %arg0, %c0_i32 : i32, i32
  }
  func.func @transform_1(%arg0: i32) -> (i32, i32) {
    %c0_i32 = arith.constant 0 : i32
    %c0_i32_0 = arith.constant 0 : i32
    %c0_i32_1 = arith.constant 0 : i32
    return %c0_i32, %c0_i32_0 : i32, i32
  }
  func.func @transform_2(%arg0: i32) -> (i32, i32) {
    %c0_i32 = arith.constant 0 : i32
    %c0_i32_0 = arith.constant 0 : i32
    %c0_i32_1 = arith.constant 0 : i32
    return %c0_i32, %c0_i32_0 : i32, i32
  }
  func.func @transform_3(%arg0: i32) -> (i32, i32) {
    %c0_i32 = arith.constant 0 : i32
    %c0_i32_0 = arith.constant 0 : i32
    return %arg0, %c0_i32 : i32, i32
  }
}

module attributes {stable_mosaic.version = 11 : i64} {
  func.func @highway_kernel(%arg0: i32, %arg1: memref<8x128xf32, #tpu.memory_space<vmem>>, %arg2: memref<128x256xf32, #tpu.memory_space<vmem>>, %arg3: memref<1x256xf32, #tpu.memory_space<vmem>>, %arg4: memref<8x128xf32, #tpu.memory_space<vmem>>) attributes {dimension_semantics = [#tpu.dimension_semantics<parallel>], iteration_bounds = array<i64: 1>, scalar_prefetch = 0 : i64, scratch_operands = 0 : i64, tpu.core_type = #tpu.core_type<tc>, window_params = [{transform_indices = @transform_0, window_bounds = array<i64: 8, 128>}, {pipeline_mode = #tpu.pipeline_mode<synchronous>, transform_indices = @transform_1, window_bounds = array<i64: 128, 256>}, {pipeline_mode = #tpu.pipeline_mode<synchronous>, transform_indices = @transform_2, window_bounds = array<i64: 1, 256>}, {transform_indices = @transform_3, window_bounds = array<i64: 8, 128>}]} {
    %c0 = arith.constant 0 : index
    %c0_0 = arith.constant 0 : index
    %0 = vector.load %arg1[%c0, %c0_0] : memref<8x128xf32, #tpu.memory_space<vmem>>, vector<8x128xf32>
    %c0_1 = arith.constant 0 : index
    %c0_2 = arith.constant 0 : index
    %1 = vector.load %arg2[%c0_1, %c0_2] : memref<128x256xf32, #tpu.memory_space<vmem>>, vector<128x256xf32>
    %cst = arith.constant dense<0.000000e+00> : vector<8x256xf32>
    %2 = tpu.matmul %0, %1, %cst {dimension_numbers = #tpu.dot_dimension_numbers<[1], [0], [0], [1], [0, 0, 1, 1], [], []>} : vector<8x128xf32>, vector<128x256xf32>, vector<8x256xf32> -> vector<8x256xf32>
    %c0_3 = arith.constant 0 : index
    %c0_4 = arith.constant 0 : index
    %3 = vector.load %arg3[%c0_3, %c0_4] : memref<1x256xf32, #tpu.memory_space<vmem>>, vector<1x256xf32>
    %4 = vector.broadcast %3 : vector<1x256xf32> to vector<8x256xf32>
    %5 = arith.addf %2, %4 : vector<8x256xf32>
    %6 = vector.extract_strided_slice %5 {offsets = [0, 0], sizes = [8, 128], strides = [1, 1]} : vector<8x256xf32> to vector<8x128xf32>
    %7 = arith.negf %6 : vector<8x128xf32>
    %8 = math.exp %7 : vector<8x128xf32>
    %cst_5 = arith.constant 1.000000e+00 : f32
    %9 = vector.broadcast %cst_5 : f32 to vector<8x128xf32>
    %10 = arith.addf %9, %8 : vector<8x128xf32>
    %11 = arith.divf %9, %10 : vector<8x128xf32>
    %12 = vector.extract_strided_slice %5 {offsets = [0, 128], sizes = [8, 128], strides = [1, 1]} : vector<8x256xf32> to vector<8x128xf32>
    %13 = arith.negf %12 : vector<8x128xf32>
    %14 = math.exp %13 : vector<8x128xf32>
    %cst_6 = arith.constant 1.000000e+00 : f32
    %15 = vector.broadcast %cst_6 : f32 to vector<8x128xf32>
    %16 = arith.addf %15, %14 : vector<8x128xf32>
    %17 = arith.divf %15, %16 : vector<8x128xf32>
    %18 = arith.subf %11, %0 : vector<8x128xf32>
    %19 = arith.mulf %17, %18 : vector<8x128xf32>
    %20 = arith.addf %0, %19 : vector<8x128xf32>
    %c0_7 = arith.constant 0 : index
    %c0_8 = arith.constant 0 : index
    %21 = vector.load %arg4[%c0_7, %c0_8] : memref<8x128xf32, #tpu.memory_space<vmem>>, vector<8x128xf32>
    tpu.vector_store %arg4[%c0_7, %c0_8], %20 {strides = array<i32>} : memref<8x128xf32, #tpu.memory_space<vmem>>, vector<8x128xf32>,
    return
  }
  func.func @transform_0(%arg0: i32) -> (i32, i32) {
    %c0_i32 = arith.constant 0 : i32
    %c0_i32_0 = arith.constant 0 : i32
    return %arg0, %c0_i32 : i32, i32
  }
  func.func @transform_1(%arg0: i32) -> (i32, i32) {
    %c0_i32 = arith.constant 0 : i32
    %c0_i32_0 = arith.constant 0 : i32
    %c0_i32_1 = arith.constant 0 : i32
    return %c0_i32, %c0_i32_0 : i32, i32
  }
  func.func @transform_2(%arg0: i32) -> (i32, i32) {
    %c0_i32 = arith.constant 0 : i32
    %c0_i32_0 = arith.constant 0 : i32
    %c0_i32_1 = arith.constant 0 : i32
    return %c0_i32, %c0_i32_0 : i32, i32
  }
  func.func @transform_3(%arg0: i32) -> (i32, i32) {
    %c0_i32 = arith.constant 0 : i32
    %c0_i32_0 = arith.constant 0 : i32
    return %arg0, %c0_i32 : i32, i32
  }
}

</mosaic_0001>

<llo_original>
// kernel: tpu_custom_call.1
$region0: #{tpu_custom_call.1}
  #allocation0 [shape = 'u32[]', space=smem, size = 0x4, offset = 0x4, fixed_abs, tag = 'smem constant byte address 0x4 - core index']
  #allocation1 [shape = 'u32[144,128]{1,0:T(1,128)}', space=vmem, size = 0x12000, scoped, tag = 'internal scratch']
  %s0 = inlined_call_operand.hbm [shape: f32[8,128], index: 0, kind: input, shape index: {}]
  %s1 = inlined_call_operand.hbm [shape: f32[128,256], index: 1, kind: input, shape index: {}]
  %s2 = inlined_call_operand.vmem [shape: f32[1,256], index: 2, kind: input, shape index: {}]
  %s3 = inlined_call_operand.hbm [shape: f32[8,128], index: 3, kind: output, shape index: {}]
  %s4 = sld [smem:[#allocation0]]
  $region30: #{tpu_custom_call.1} parent=0
    _
  %s6 = ssub.s32 1, %s4
  %s7 = scalar_select 0, %s6, %s4
  $region1: #{tpu_custom_call.1} parent=0
    #allocation2 [shape = 'u8[4096]{0}', space=vmem, size = 0x1000, scoped, tag = 'input window, operand 0, single buffered']
    #allocation3 [shape = 's32[1]{0}', space=sflag, size = 0x4, scoped, tag = 'scoped memory for tpu_custom_call.1']
    #allocation4 [shape = 's32[1]{0}', space=sflag, size = 0x4, scoped, tag = 'scoped memory for tpu_custom_call.1']
    #allocation5 [shape = 'u8[131072]{0}', space=vmem, size = 0x20000, scoped, tag = 'input window, operand 1, single buffered']
    #allocation6 [shape = 's32[1]{0}', space=sflag, size = 0x4, scoped, tag = 'scoped memory for tpu_custom_call.1']
    #allocation7 [shape = 'u8[4096]{0}', space=vmem, size = 0x1000, scoped, tag = 'output window, operand 0, single buffered']
    %8 = vsyncpa [#allocation3], 0
    %9 = vsyncpa [#allocation6], 0
    %10 = vsyncpa [#allocation4], 0
    // Predicated region
    $region2: #{tpu_custom_call.1} parent=1 // pred_check
      _
    $region3: #{tpu_custom_call.1} parent=1 // pred_check_branch
      %12 = sbr.rel (0) target = $region5
    $region4: #{tpu_custom_call.1} parent=1 // pred_region
      %s14 = ssub.s32 128, 128
      %15 = vsyncadd [#allocation3], %s14
      %s17 = sshll.u32 [#allocation2], 4
      %s18 = int_to_ptr.vmem [resolvable:$true] %s17
      %20 = dma.hbm_to_vmem [thread:$0]  %s0, 128, %s18, [#allocation3]
    $region5: #{tpu_custom_call.1} parent=1 // pred_fallthru
      _
    // Predicated region
    $region6: #{tpu_custom_call.1} parent=1 // pred_check
      _
    $region7: #{tpu_custom_call.1} parent=1 // pred_check_branch
      %22 = sbr.rel (0) target = $region9
    $region8: #{tpu_custom_call.1} parent=1 // pred_region
      %s24 = ssub.s32 4096, 4096
      %25 = vsyncadd [#allocation6], %s24
      %s26 = sshll.u32 [#allocation5], 4
      %s27 = int_to_ptr.vmem [resolvable:$true] %s26
      %32 = dma.hbm_to_vmem [thread:$0]  %s1, 4096, %s27, [#allocation6], 256, 256, 16
    $region9: #{tpu_custom_call.1} parent=1 // pred_fallthru
      _
    // Predicated region
    $region10: #{tpu_custom_call.1} parent=1 // pred_check
      _
    $region11: #{tpu_custom_call.1} parent=1 // pred_check_branch
      %34 = sbr.rel (0) target = $region13
    $region12: #{tpu_custom_call.1} parent=1 // pred_region
      _
    $region13: #{tpu_custom_call.1} parent=1 // pred_fallthru
      _
    // Predicated region
    $region14: #{tpu_custom_call.1} parent=1 // pred_check
      _
    $region15: #{tpu_custom_call.1} parent=1 // pred_check_branch
      %36 = sbr.rel (0) target = $region17
    $region16: #{tpu_custom_call.1} parent=1 // pred_region
      %37 = dma.done [#allocation3], 128
    $region17: #{tpu_custom_call.1} parent=1 // pred_fallthru
      _
    // Predicated region
    $region18: #{tpu_custom_call.1} parent=1 // pred_check
      _
    $region19: #{tpu_custom_call.1} parent=1 // pred_check_branch
      %39 = sbr.rel (0) target = $region21
    $region20: #{tpu_custom_call.1} parent=1 // pred_region
      %40 = dma.done [#allocation6], 4096
    $region21: #{tpu_custom_call.1} parent=1 // pred_fallthru
      _
    %v41 = vld [vmem:[#allocation2] sm:$0xff]
    %v42 = vld [vmem:[#allocation5] sm:$0xff]
    %v43 = vld [vmem:[#allocation5 + $0x8] sm:$0xff]
    %v44 = vld [vmem:[#allocation5 + $0x10] sm:$0xff]
    %v45 = vld [vmem:[#allocation5 + $0x18] sm:$0xff]
    %v46 = vld [vmem:[#allocation5 + $0x20] sm:$0xff]
    %v47 = vld [vmem:[#allocation5 + $0x28] sm:$0xff]
    %v48 = vld [vmem:[#allocation5 + $0x30] sm:$0xff]
    %v49 = vld [vmem:[#allocation5 + $0x38] sm:$0xff]
    %v50 = vld [vmem:[#allocation5 + $0x40] sm:$0xff]
    %v51 = vld [vmem:[#allocation5 + $0x48] sm:$0xff]
    %v52 = vld [vmem:[#allocation5 + $0x50] sm:$0xff]
    %v53 = vld [vmem:[#allocation5 + $0x58] sm:$0xff]
    %v54 = vld [vmem:[#allocation5 + $0x60] sm:$0xff]
    %v55 = vld [vmem:[#allocation5 + $0x68] sm:$0xff]
    %v56 = vld [vmem:[#allocation5 + $0x70] sm:$0xff]
    %v57 = vld [vmem:[#allocation5 + $0x78] sm:$0xff]
    %v58 = vld [vmem:[#allocation5 + $0x80] sm:$0xff]
    %v59 = vld [vmem:[#allocation5 + $0x88] sm:$0xff]
    %v60 = vld [vmem:[#allocation5 + $0x90] sm:$0xff]
    %v61 = vld [vmem:[#allocation5 + $0x98] sm:$0xff]
    %v62 = vld [vmem:[#allocation5 + $0xa0] sm:$0xff]
    %v63 = vld [vmem:[#allocation5 + $0xa8] sm:$0xff]
    %v64 = vld [vmem:[#allocation5 + $0xb0] sm:$0xff]
    %v65 = vld [vmem:[#allocation5 + $0xb8] sm:$0xff]
    %v66 = vld [vmem:[#allocation5 + $0xc0] sm:$0xff]
    %v67 = vld [vmem:[#allocation5 + $0xc8] sm:$0xff]
    %v68 = vld [vmem:[#allocation5 + $0xd0] sm:$0xff]
    %v69 = vld [vmem:[#allocation5 + $0xd8] sm:$0xff]
    %v70 = vld [vmem:[#allocation5 + $0xe0] sm:$0xff]
    %v71 = vld [vmem:[#allocation5 + $0xe8] sm:$0xff]
    %v72 = vld [vmem:[#allocation5 + $0xf0] sm:$0xff]
    %v73 = vld [vmem:[#allocation5 + $0xf8] sm:$0xff]
    %v74 = vld [vmem:[%s2] sm:$0x3]
    %v76 = vlaneseq
    %v77 = vshrl.u32 %v76, 7
    %v78 = vsub.s32 0, %v77
    %v79 = vrot.slane %v74, %v78
    %v80 = vlaneseq
    %v81 = vshrl.u32 %v80, 7
    %v82 = vsub.s32 1, %v81
    %v83 = vrot.slane %v74, %v82
    %86 = vmatprep.subr.mxu0 %v43
    %87 = vmatpush1.msra.mxu0 %v42
    %88 = vmatprep.subr.mxu0 %v45
    %89 = vmatpush1.msra.mxu0 %v44
    %90 = vmatprep.subr.mxu0 %v47
    %91 = vmatpush1.msra.mxu0 %v46
    %92 = vmatprep.subr.mxu0 %v49
    %93 = vmatpush1.msra.mxu0 %v48
    %94 = vmatprep.subr.mxu0 %v51
    %95 = vmatpush1.msra.mxu0 %v50
    %96 = vmatprep.subr.mxu0 %v53
    %97 = vmatpush1.msra.mxu0 %v52
    %98 = vmatprep.subr.mxu0 %v55
    %99 = vmatpush1.msra.mxu0 %v54
    %100 = vmatprep.subr.mxu0 %v57
    %101 = vmatpush1.msra.mxu0 %v56
    %102 = vmatprep.subr.mxu0 %v59
    %103 = vmatpush1.msra.mxu0 %v58
    %104 = vmatprep.subr.mxu0 %v61
    %105 = vmatpush1.msra.mxu0 %v60
    %106 = vmatprep.subr.mxu0 %v63
    %107 = vmatpush1.msra.mxu0 %v62
    %108 = vmatprep.subr.mxu0 %v65
    %109 = vmatpush1.msra.mxu0 %v64
    %110 = vmatprep.subr.mxu0 %v67
    %111 = vmatpush1.msra.mxu0 %v66
    %112 = vmatprep.subr.mxu0 %v69
    %113 = vmatpush1.msra.mxu0 %v68
    %114 = vmatprep.subr.mxu0 %v71
    %115 = vmatpush1.msra.mxu0 %v70
    %116 = vmatprep.subr.mxu0 %v73
    %117 = vmatpush1.msra.mxu0 %v72
    %118 = vmatprep.subr.mxu0 0.0
    %119 = vmatpush1.msra.mxu0 0.0
    %120 = vmatprep.subr.mxu0 0.0
    %121 = vmatpush1.msra.mxu0 0.0
    %122 = vmatprep.subr.mxu0 0.0
    %123 = vmatpush1.msra.mxu0 0.0
    %124 = vmatprep.subr.mxu0 0.0
    %125 = vmatpush1.msra.mxu0 0.0
    %126 = vmatprep.subr.mxu0 0.0
    %127 = vmatpush1.msra.mxu0 0.0
    %128 = vmatprep.subr.mxu0 0.0
    %129 = vmatpush1.msra.mxu0 0.0
    %130 = vmatprep.subr.mxu0 0.0
    %131 = vmatpush1.msra.mxu0 0.0
    %132 = vmatprep.subr.mxu0 0.0
    %133 = vmatpush1.msra.mxu0 0.0
    %134 = vmatprep.subr.mxu0 0.0
    %135 = vmatpush1.msra.mxu0 0.0
    %136 = vmatprep.subr.mxu0 0.0
    %137 = vmatpush1.msra.mxu0 0.0
    %138 = vmatprep.subr.mxu0 0.0
    %139 = vmatpush1.msra.mxu0 0.0
    %140 = vmatprep.subr.mxu0 0.0
    %141 = vmatpush1.msra.mxu0 0.0
    %142 = vmatprep.subr.mxu0 0.0
    %143 = vmatpush1.msra.mxu0 0.0
    %144 = vmatprep.subr.mxu0 0.0
    %145 = vmatpush1.msra.mxu0 0.0
    %146 = vmatprep.subr.mxu0 0.0
    %147 = vmatpush1.msra.mxu0 0.0
    %148 = vmatprep.subr.mxu0 0.0
    %149 = vmatpush1.msra.mxu0 0.0
    %150 = vmatprep.mubr.f32.mxu0 0.0
    %151 = vmatmul.mubr.f32.gmra.mrb[0].mxu0 %v41
    %v152 = vpop.f32.mrb[0].mxu0
    %v153 = vadd.f32 %v79, %v152
    %v154 = vpop.f32.mrb[0].mxu0
    %v155 = vadd.f32 %v83, %v154
    %156 = vdwg.mxu0
    %v157 = vxor.u32 %v153, 2147483648
    %v158 = vmul.f32 %v157, 1.442695
    %v159 = vpow.pop %v158
    %v160 = vadd.f32 %v159, 1.0
    %v161 = vrcp.pop %v160
    %v162 = vmul.f32 1.0, %v161
    %v163 = vxor.u32 %v155, 2147483648
    %v164 = vmul.f32 %v163, 1.442695
    %v165 = vpow.pop %v164
    %v166 = vadd.f32 %v165, 1.0
    %v167 = vrcp.pop %v166
    %v168 = vmul.f32 1.0, %v167
    %v169 = vsub.f32 %v162, %v41
    %v170 = vmul.f32 %v168, %v169
    %v171 = vadd.f32 %v41, %v170
    %172 = vst [vmem:[#allocation7] sm:$0xff] %v171
    // Predicated region
    $region22: #{tpu_custom_call.1} parent=1 // pred_check
      _
    $region23: #{tpu_custom_call.1} parent=1 // pred_check_branch
      %174 = sbr.rel (0) target = $region25
    $region24: #{tpu_custom_call.1} parent=1 // pred_region
      %s176 = ssub.s32 128, 128
      %177 = vsyncadd [#allocation4], %s176
      %s179 = sshll.u32 [#allocation7], 4
      %s180 = int_to_ptr.vmem [resolvable:$true] %s179
      %182 = dma.vmem_to_hbm [thread:$0]  %s180, 128, %s3, [#allocation4]
    $region25: #{tpu_custom_call.1} parent=1 // pred_fallthru
      _
    // Predicated region
    $region26: #{tpu_custom_call.1} parent=1 // pred_check
      _
    $region27: #{tpu_custom_call.1} parent=1 // pred_check_branch
      %184 = sbr.rel (0) target = $region29
    $region28: #{tpu_custom_call.1} parent=1 // pred_region
      %185 = dma.done [#allocation4], 128
    $region29: #{tpu_custom_call.1} parent=1 // pred_fallthru
      _
    %186 = vsyncpa [#allocation3], 1
    %187 = vsyncpa [#allocation6], 1
    %188 = vsyncpa [#allocation4], 1

// kernel: tpu_custom_call.1
$region0: #{tpu_custom_call.1}
  #allocation0 [shape = 'u32[]', space=smem, size = 0x4, offset = 0x4, fixed_abs, tag = 'smem constant byte address 0x4 - core index']
  #allocation1 [shape = 'u32[144,128]{1,0:T(1,128)}', space=vmem, size = 0x12000, scoped, tag = 'internal scratch']
  %s0 = inlined_call_operand.hbm [shape: f32[8,128], index: 0, kind: input, shape index: {}]
  %s1 = inlined_call_operand.hbm [shape: f32[128,256], index: 1, kind: input, shape index: {}]
  %s2 = inlined_call_operand.vmem [shape: f32[1,256], index: 2, kind: input, shape index: {}]
  %s3 = inlined_call_operand.hbm [shape: f32[8,128], index: 3, kind: output, shape index: {}]
  %s4 = sld [smem:[#allocation0]]
  $region30: #{tpu_custom_call.1} parent=0
    _
  %s6 = ssub.s32 1, %s4
  %s7 = scalar_select 0, %s6, %s4
  $region1: #{tpu_custom_call.1} parent=0
    #allocation2 [shape = 'u8[4096]{0}', space=vmem, size = 0x1000, scoped, tag = 'input window, operand 0, single buffered']
    #allocation3 [shape = 's32[1]{0}', space=sflag, size = 0x4, scoped, tag = 'scoped memory for tpu_custom_call.1']
    #allocation4 [shape = 's32[1]{0}', space=sflag, size = 0x4, scoped, tag = 'scoped memory for tpu_custom_call.1']
    #allocation5 [shape = 'u8[131072]{0}', space=vmem, size = 0x20000, scoped, tag = 'input window, operand 1, single buffered']
    #allocation6 [shape = 's32[1]{0}', space=sflag, size = 0x4, scoped, tag = 'scoped memory for tpu_custom_call.1']
    #allocation7 [shape = 'u8[4096]{0}', space=vmem, size = 0x1000, scoped, tag = 'output window, operand 0, single buffered']
    %8 = vsyncpa [#allocation3], 0
    %9 = vsyncpa [#allocation6], 0
    %10 = vsyncpa [#allocation4], 0
    // Predicated region
    $region2: #{tpu_custom_call.1} parent=1 // pred_check
      _
    $region3: #{tpu_custom_call.1} parent=1 // pred_check_branch
      %12 = sbr.rel (0) target = $region5
    $region4: #{tpu_custom_call.1} parent=1 // pred_region
      %s14 = ssub.s32 128, 128
      %15 = vsyncadd [#allocation3], %s14
      %s17 = sshll.u32 [#allocation2], 4
      %s18 = int_to_ptr.vmem [resolvable:$true] %s17
      %20 = dma.hbm_to_vmem [thread:$0]  %s0, 128, %s18, [#allocation3]
    $region5: #{tpu_custom_call.1} parent=1 // pred_fallthru
      _
    // Predicated region
    $region6: #{tpu_custom_call.1} parent=1 // pred_check
      _
    $region7: #{tpu_custom_call.1} parent=1 // pred_check_branch
      %22 = sbr.rel (0) target = $region9
    $region8: #{tpu_custom_call.1} parent=1 // pred_region
      %s24 = ssub.s32 4096, 4096
      %25 = vsyncadd [#allocation6], %s24
      %s26 = sshll.u32 [#allocation5], 4
      %s27 = int_to_ptr.vmem [resolvable:$true] %s26
      %32 = dma.hbm_to_vmem [thread:$0]  %s1, 4096, %s27, [#allocation6], 256, 256, 16
    $region9: #{tpu_custom_call.1} parent=1 // pred_fallthru
      _
    // Predicated region
    $region10: #{tpu_custom_call.1} parent=1 // pred_check
      _
    $region11: #{tpu_custom_call.1} parent=1 // pred_check_branch
      %34 = sbr.rel (0) target = $region13
    $region12: #{tpu_custom_call.1} parent=1 // pred_region
      _
    $region13: #{tpu_custom_call.1} parent=1 // pred_fallthru
      _
    // Predicated region
    $region14: #{tpu_custom_call.1} parent=1 // pred_check
      _
    $region15: #{tpu_custom_call.1} parent=1 // pred_check_branch
      %36 = sbr.rel (0) target = $region17
    $region16: #{tpu_custom_call.1} parent=1 // pred_region
      %37 = dma.done [#allocation3], 128
    $region17: #{tpu_custom_call.1} parent=1 // pred_fallthru
      _
    // Predicated region
    $region18: #{tpu_custom_call.1} parent=1 // pred_check
      _
    $region19: #{tpu_custom_call.1} parent=1 // pred_check_branch
      %39 = sbr.rel (0) target = $region21
    $region20: #{tpu_custom_call.1} parent=1 // pred_region
      %40 = dma.done [#allocation6], 4096
    $region21: #{tpu_custom_call.1} parent=1 // pred_fallthru
      _
    %v41 = vld [vmem:[#allocation2] sm:$0xff]
    %v42 = vld [vmem:[#allocation5] sm:$0xff]
    %v43 = vld [vmem:[#allocation5 + $0x8] sm:$0xff]
    %v44 = vld [vmem:[#allocation5 + $0x10] sm:$0xff]
    %v45 = vld [vmem:[#allocation5 + $0x18] sm:$0xff]
    %v46 = vld [vmem:[#allocation5 + $0x20] sm:$0xff]
    %v47 = vld [vmem:[#allocation5 + $0x28] sm:$0xff]
    %v48 = vld [vmem:[#allocation5 + $0x30] sm:$0xff]
    %v49 = vld [vmem:[#allocation5 + $0x38] sm:$0xff]
    %v50 = vld [vmem:[#allocation5 + $0x40] sm:$0xff]
    %v51 = vld [vmem:[#allocation5 + $0x48] sm:$0xff]
    %v52 = vld [vmem:[#allocation5 + $0x50] sm:$0xff]
    %v53 = vld [vmem:[#allocation5 + $0x58] sm:$0xff]
    %v54 = vld [vmem:[#allocation5 + $0x60] sm:$0xff]
    %v55 = vld [vmem:[#allocation5 + $0x68] sm:$0xff]
    %v56 = vld [vmem:[#allocation5 + $0x70] sm:$0xff]
    %v57 = vld [vmem:[#allocation5 + $0x78] sm:$0xff]
    %v58 = vld [vmem:[#allocation5 + $0x80] sm:$0xff]
    %v59 = vld [vmem:[#allocation5 + $0x88] sm:$0xff]
    %v60 = vld [vmem:[#allocation5 + $0x90] sm:$0xff]
    %v61 = vld [vmem:[#allocation5 + $0x98] sm:$0xff]
    %v62 = vld [vmem:[#allocation5 + $0xa0] sm:$0xff]
    %v63 = vld [vmem:[#allocation5 + $0xa8] sm:$0xff]
    %v64 = vld [vmem:[#allocation5 + $0xb0] sm:$0xff]
    %v65 = vld [vmem:[#allocation5 + $0xb8] sm:$0xff]
    %v66 = vld [vmem:[#allocation5 + $0xc0] sm:$0xff]
    %v67 = vld [vmem:[#allocation5 + $0xc8] sm:$0xff]
    %v68 = vld [vmem:[#allocation5 + $0xd0] sm:$0xff]
    %v69 = vld [vmem:[#allocation5 + $0xd8] sm:$0xff]
    %v70 = vld [vmem:[#allocation5 + $0xe0] sm:$0xff]
    %v71 = vld [vmem:[#allocation5 + $0xe8] sm:$0xff]
    %v72 = vld [vmem:[#allocation5 + $0xf0] sm:$0xff]
    %v73 = vld [vmem:[#allocation5 + $0xf8] sm:$0xff]
    %v74 = vld [vmem:[%s2] sm:$0x3]
    %v76 = vlaneseq
    %v77 = vshrl.u32 %v76, 7
    %v78 = vsub.s32 0, %v77
    %v79 = vrot.slane %v74, %v78
    %v80 = vlaneseq
    %v81 = vshrl.u32 %v80, 7
    %v82 = vsub.s32 1, %v81
    %v83 = vrot.slane %v74, %v82
    %86 = vmatprep.subr.mxu0 %v43
    %87 = vmatpush1.msra.mxu0 %v42
    %88 = vmatprep.subr.mxu0 %v45
    %89 = vmatpush1.msra.mxu0 %v44
    %90 = vmatprep.subr.mxu0 %v47
    %91 = vmatpush1.msra.mxu0 %v46
    %92 = vmatprep.subr.mxu0 %v49
    %93 = vmatpush1.msra.mxu0 %v48
    %94 = vmatprep.subr.mxu0 %v51
    %95 = vmatpush1.msra.mxu0 %v50
    %96 = vmatprep.subr.mxu0 %v53
    %97 = vmatpush1.msra.mxu0 %v52
    %98 = vmatprep.subr.mxu0 %v55
    %99 = vmatpush1.msra.mxu0 %v54
    %100 = vmatprep.subr.mxu0 %v57
    %101 = vmatpush1.msra.mxu0 %v56
    %102 = vmatprep.subr.mxu0 %v59
    %103 = vmatpush1.msra.mxu0 %v58
    %104 = vmatprep.subr.mxu0 %v61
    %105 = vmatpush1.msra.mxu0 %v60
    %106 = vmatprep.subr.mxu0 %v63
    %107 = vmatpush1.msra.mxu0 %v62
    %108 = vmatprep.subr.mxu0 %v65
    %109 = vmatpush1.msra.mxu0 %v64
    %110 = vmatprep.subr.mxu0 %v67
    %111 = vmatpush1.msra.mxu0 %v66
    %112 = vmatprep.subr.mxu0 %v69
    %113 = vmatpush1.msra.mxu0 %v68
    %114 = vmatprep.subr.mxu0 %v71
    %115 = vmatpush1.msra.mxu0 %v70
    %116 = vmatprep.subr.mxu0 %v73
    %117 = vmatpush1.msra.mxu0 %v72
    %118 = vmatprep.subr.mxu0 0.0
    %119 = vmatpush1.msra.mxu0 0.0
    %120 = vmatprep.subr.mxu0 0.0
    %121 = vmatpush1.msra.mxu0 0.0
    %122 = vmatprep.subr.mxu0 0.0
    %123 = vmatpush1.msra.mxu0 0.0
    %124 = vmatprep.subr.mxu0 0.0
    %125 = vmatpush1.msra.mxu0 0.0
    %126 = vmatprep.subr.mxu0 0.0
    %127 = vmatpush1.msra.mxu0 0.0
    %128 = vmatprep.subr.mxu0 0.0
    %129 = vmatpush1.msra.mxu0 0.0
    %130 = vmatprep.subr.mxu0 0.0
    %131 = vmatpush1.msra.mxu0 0.0
    %132 = vmatprep.subr.mxu0 0.0
    %133 = vmatpush1.msra.mxu0 0.0
    %134 = vmatprep.subr.mxu0 0.0
    %135 = vmatpush1.msra.mxu0 0.0
    %136 = vmatprep.subr.mxu0 0.0
    %137 = vmatpush1.msra.mxu0 0.0
    %138 = vmatprep.subr.mxu0 0.0
    %139 = vmatpush1.msra.mxu0 0.0
    %140 = vmatprep.subr.mxu0 0.0
    %141 = vmatpush1.msra.mxu0 0.0
    %142 = vmatprep.subr.mxu0 0.0
    %143 = vmatpush1.msra.mxu0 0.0
    %144 = vmatprep.subr.mxu0 0.0
    %145 = vmatpush1.msra.mxu0 0.0
    %146 = vmatprep.subr.mxu0 0.0
    %147 = vmatpush1.msra.mxu0 0.0
    %148 = vmatprep.subr.mxu0 0.0
    %149 = vmatpush1.msra.mxu0 0.0
    %150 = vmatprep.mubr.f32.mxu0 0.0
    %151 = vmatmul.mubr.f32.gmra.mrb[0].mxu0 %v41
    %v152 = vpop.f32.mrb[0].mxu0
    %v153 = vadd.f32 %v79, %v152
    %v154 = vpop.f32.mrb[0].mxu0
    %v155 = vadd.f32 %v83, %v154
    %156 = vdwg.mxu0
    %v157 = vxor.u32 %v153, 2147483648
    %v158 = vmul.f32 %v157, 1.442695
    %v159 = vpow.pop %v158
    %v160 = vadd.f32 %v159, 1.0
    %v161 = vrcp.pop %v160
    %v162 = vmul.f32 1.0, %v161
    %v163 = vxor.u32 %v155, 2147483648
    %v164 = vmul.f32 %v163, 1.442695
    %v165 = vpow.pop %v164
    %v166 = vadd.f32 %v165, 1.0
    %v167 = vrcp.pop %v166
    %v168 = vmul.f32 1.0, %v167
    %v169 = vsub.f32 %v162, %v41
    %v170 = vmul.f32 %v168, %v169
    %v171 = vadd.f32 %v41, %v170
    %172 = vst [vmem:[#allocation7] sm:$0xff] %v171
    // Predicated region
    $region22: #{tpu_custom_call.1} parent=1 // pred_check
      _
    $region23: #{tpu_custom_call.1} parent=1 // pred_check_branch
      %174 = sbr.rel (0) target = $region25
    $region24: #{tpu_custom_call.1} parent=1 // pred_region
      %s176 = ssub.s32 128, 128
      %177 = vsyncadd [#allocation4], %s176
      %s179 = sshll.u32 [#allocation7], 4
      %s180 = int_to_ptr.vmem [resolvable:$true] %s179
      %182 = dma.vmem_to_hbm [thread:$0]  %s180, 128, %s3, [#allocation4]
    $region25: #{tpu_custom_call.1} parent=1 // pred_fallthru
      _
    // Predicated region
    $region26: #{tpu_custom_call.1} parent=1 // pred_check
      _
    $region27: #{tpu_custom_call.1} parent=1 // pred_check_branch
      %184 = sbr.rel (0) target = $region29
    $region28: #{tpu_custom_call.1} parent=1 // pred_region
      %185 = dma.done [#allocation4], 128
    $region29: #{tpu_custom_call.1} parent=1 // pred_fallthru
      _
    %186 = vsyncpa [#allocation3], 1
    %187 = vsyncpa [#allocation6], 1
    %188 = vsyncpa [#allocation4], 1

</llo_original>
